<compile_context>
chip_gen: v6e
topology: v6e:2x2x1
jax: 0.10.0
libtpu: 0.0.40
codegen_flags: <defaults>
</compile_context>

<pallas_src>
import functools

import jax
import jax.numpy as jnp
from jax.experimental import pallas as pl
from jax.experimental.pallas import tpu as pltpu

EPS = 1e-5  # nn.LayerNorm default


def prenorm_residual_kernel(x_ref, g_ref, b_ref, w_ref, wb_ref, o_ref, *, n_valid):
    # x_ref block: (TB, F_pad), lane-dense (F_pad is a multiple of 128).
    x = x_ref[...].astype(jnp.float32)
    f_pad = x.shape[-1]
    inv_n = 1.0 / n_valid

    # --- LayerNorm over (dim, prediction_length) == flat feature axis; two-pass stats ---
    mean = jnp.sum(x, axis=-1, keepdims=True) * inv_n            # padded cols are zero
    xc = x - mean
    if n_valid != f_pad:  # static Python branch: mask only when feature padding exists
        col = jax.lax.broadcasted_iota(jnp.int32, xc.shape, dimension=1)
        sq = jnp.where(col < n_valid, xc * xc, 0.0)
    else:
        sq = xc * xc
    var = jnp.sum(sq, axis=-1, keepdims=True) * inv_n
    inv = jax.lax.rsqrt(var + EPS)
    y = xc * inv * g_ref[...] + b_ref[...]                       # padded cols: gamma=beta=0 -> 0

    # --- fn: Linear(L -> L) along the last axis, folded into ONE lane-dense matmul ---
    # w_ref holds kron(I_D, W.T), pre-built in the wrapper; zero rows/cols in the padding.
    z = jnp.dot(y.astype(w_ref.dtype), w_ref[...],
                preferred_element_type=jnp.float32) + wb_ref[...]

    # --- residual: re-read the resident VMEM input block (keeps the f32 copy of x out of
    # the live range across the matmul -> less vreg/VMEM pressure) ---
    o_ref[...] = (z + x_ref[...].astype(jnp.float32)).astype(o_ref.dtype)


def _vmem_limit_and_budget():
    """Generation-aware scoped-VMEM request and the slice of it our tiles may use."""
    cap = 64 * 1024 * 1024
    try:
        cap = int(getattr(pltpu.get_tpu_info(), "vmem_capacity_bytes", cap))
    except Exception:
        pass
    # ~48 MiB on v7x (64 MiB physical), up to 96 MiB on v5e/v6e (128 MiB physical).
    limit = min(cap * 3 // 4, 96 * 1024 * 1024)
    budget = limit // 2  # headroom for compiler temps / double-buffered param blocks
    return int(limit), int(budget)


def _choose_batch_tile(B, F_pad, in_itemsize, out_itemsize, budget_bytes, *,
                       min_steps=4, target_tile_bytes=2 * 1024 * 1024):
    """Batch rows per grid step: sized by bytes (mem-bound), VMEM-safe, >= min_steps steps."""
    # Per batch row: double-buffered input + output blocks plus ~4 f32 temps (x, xc, y, z).
    per_row = F_pad * (2 * in_itemsize + 2 * out_itemsize + 4 * 4)
    tb = max(1, budget_bytes // per_row)
    tb = min(tb, max(1, target_tile_bytes // (F_pad * in_itemsize)))
    if B >= min_steps:                      # keep >= 2 grid steps per v7x TensorCore
        tb = min(tb, max(1, B // min_steps))
    tb = max(1, min(tb, B))
    if B <= tb:
        return B                            # single full-extent block
    return max(8, (tb // 8) * 8)            # sublane-aligned tiles for the multi-step case


def prenorm_residual(x, gamma, beta, w, w_bias, *, matmul_dtype=None):
    """x: (B, dim, L); gamma/beta: (dim, L); w: (L, L); w_bias: (L,).

    matmul_dtype: pass jnp.bfloat16 to force native-rate bf16 MXU operands
    (f32 accumulation); default follows the weight dtype so f32 tests stay exact.
    """
    B, D, L = x.shape
    F = D * L
    F_pad = ((F + 127) // 128) * 128        # lane-dense feature axis
    # TODO(synk): for very large dim*prediction_length the dense kron(I_D, W.T) weight becomes
    # wasteful; that regime wants a per-(dim, L) matmul path instead of the block-diagonal one.

    mm_dtype = matmul_dtype if matmul_dtype is not None else w.dtype

    limit_bytes, budget_bytes = _vmem_limit_and_budget()
    tb = _choose_batch_tile(B, F_pad, x.dtype.itemsize, x.dtype.itemsize, budget_bytes)
    B_pad = ((B + tb - 1) // tb) * tb
    grid = (B_pad // tb,)

    # ---- wrapper-side layout plumbing (done once, grid-invariant) ----
    x2 = x.reshape(B, F)
    if B_pad != B or F_pad != F:
        x2 = jnp.pad(x2, ((0, B_pad - B), (0, F_pad - F)))
    g2 = jnp.pad(gamma.reshape(1, F).astype(jnp.float32), ((0, 0), (0, F_pad - F)))
    b2 = jnp.pad(beta.reshape(1, F).astype(jnp.float32), ((0, 0), (0, F_pad - F)))
    wbig = jnp.kron(jnp.eye(D, dtype=jnp.float32),
                    jnp.swapaxes(w, 0, 1).astype(jnp.float32))          # (F, F) block-diag W.T
    wbig = jnp.pad(wbig, ((0, F_pad - F), (0, F_pad - F))).astype(mm_dtype)
    wb2 = jnp.pad(jnp.tile(w_bias.reshape(-1).astype(jnp.float32), D).reshape(1, F),
                  ((0, 0), (0, F_pad - F)))

    cost = pl.CostEstimate(
        flops=int(2 * B_pad * F_pad * F_pad + 10 * B_pad * F_pad),
        transcendentals=int(B_pad),
        bytes_accessed=int(2 * B_pad * F_pad * x.dtype.itemsize
                           + 3 * F_pad * 4
                           + F_pad * F_pad * jnp.dtype(mm_dtype).itemsize),
    )

    out = pl.pallas_call(
        functools.partial(prenorm_residual_kernel, n_valid=F),
        out_shape=jax.ShapeDtypeStruct((B_pad, F_pad), x.dtype),
        grid_spec=pltpu.PrefetchScalarGridSpec(
            num_scalar_prefetch=0,
            grid=grid,
            in_specs=[
                pl.BlockSpec((tb, F_pad), lambda i: (i, 0)),       # x, lane-dense batch slab
                pl.BlockSpec((1, F_pad), lambda i: (0, 0)),        # gamma (grid-invariant)
                pl.BlockSpec((1, F_pad), lambda i: (0, 0)),        # beta
                pl.BlockSpec((F_pad, F_pad), lambda i: (0, 0)),    # kron(I_D, W.T)
                pl.BlockSpec((1, F_pad), lambda i: (0, 0)),        # bias, tiled per dim-chunk
            ],
            out_specs=pl.BlockSpec((tb, F_pad), lambda i: (i, 0)),
        ),
        compiler_params=pltpu.CompilerParams(
            dimension_semantics=("parallel",),
            vmem_limit_bytes=limit_bytes,
        ),
        cost_estimate=cost,
    )(x2, g2, b2, wbig, wb2)

    return out[:B, :F].reshape(B, D, L)


def reference(x, gamma, beta, w, w_bias):
    x32 = x.astype(jnp.float32)
    mean = jnp.mean(x32, axis=(1, 2), keepdims=True)
    var = jnp.mean((x32 - mean) ** 2, axis=(1, 2), keepdims=True)
    xn = (x32 - mean) * jax.lax.rsqrt(var + EPS)
    y = xn * gamma[None] + beta[None]
    z = jnp.einsum("bdl,kl->bdk", y, w) + w_bias[None, None, :]
    return (z + x32).astype(x.dtype)


if __name__ == "__main__":
    B, D, L = 2, 8, 16  # batch, dim, prediction_length  (D*L = 128 -> naturally lane-dense)

    key = jax.random.PRNGKey(0)
    kx, kg, kb, kw, kwb = jax.random.split(key, 5)

    x = jax.random.normal(kx, (B, D, L), dtype=jnp.float32)
    # LayerNorm params (deterministic, slightly perturbed from identity init)
    gamma = 1.0 + 0.1 * jax.random.normal(kg, (D, L), dtype=jnp.float32)
    beta = 0.1 * jax.random.normal(kb, (D, L), dtype=jnp.float32)
    # fn = Linear(L, L) params
    w = jax.random.normal(kw, (L, L), dtype=jnp.float32) / jnp.sqrt(L)
    w_bias = 0.1 * jax.random.normal(kwb, (L,), dtype=jnp.float32)

    out = jax.block_until_ready(prenorm_residual(x, gamma, beta, w, w_bias))

    ref = reference(x, gamma, beta, w, w_bias)
    assert out.shape == (B, D, L)
    assert jnp.allclose(out, ref, atol=1e-4, rtol=1e-4), "mismatch vs reference"

    print("KERNEL_OK")
</pallas_src>

<mosaic_0001>
module attributes {stable_mosaic.version = 11 : i64} {
  func.func @prenorm_residual_kernel(%arg0: i32, %arg1: memref<2x128xf32, #tpu.memory_space<vmem>>, %arg2: memref<1x128xf32, #tpu.memory_space<vmem>>, %arg3: memref<1x128xf32, #tpu.memory_space<vmem>>, %arg4: memref<128x128xf32, #tpu.memory_space<vmem>>, %arg5: memref<1x128xf32, #tpu.memory_space<vmem>>, %arg6: memref<2x128xf32, #tpu.memory_space<vmem>>) attributes {dimension_semantics = [#tpu.dimension_semantics<parallel>], iteration_bounds = array<i64: 1>, scalar_prefetch = 0 : i64, scratch_operands = 0 : i64, tpu.core_type = #tpu.core_type<tc>, window_params = [{transform_indices = @transform_0, window_bounds = array<i64: 2, 128>}, {pipeline_mode = #tpu.pipeline_mode<synchronous>, transform_indices = @transform_1, window_bounds = array<i64: 1, 128>}, {pipeline_mode = #tpu.pipeline_mode<synchronous>, transform_indices = @transform_2, window_bounds = array<i64: 1, 128>}, {pipeline_mode = #tpu.pipeline_mode<synchronous>, transform_indices = @transform_3, window_bounds = array<i64: 128, 128>}, {pipeline_mode = #tpu.pipeline_mode<synchronous>, transform_indices = @transform_4, window_bounds = array<i64: 1, 128>}, {transform_indices = @transform_5, window_bounds = array<i64: 2, 128>}]} {
    %c0 = arith.constant 0 : index
    %c0_0 = arith.constant 0 : index
    %0 = vector.load %arg1[%c0, %c0_0] : memref<2x128xf32, #tpu.memory_space<vmem>>, vector<2x128xf32>
    %cst = arith.constant dense<0.000000e+00> : vector<2xf32>
    %1 = vector.multi_reduction <add>, %0, %cst [1] : vector<2x128xf32> to vector<2xf32>
    %2 = vector.shape_cast %1 : vector<2xf32> to vector<2x1xf32>
    %cst_1 = arith.constant 7.812500e-03 : f32
    %3 = vector.broadcast %cst_1 : f32 to vector<2x1xf32>
    %4 = arith.mulf %2, %3 : vector<2x1xf32>
    %5 = vector.broadcast %4 : vector<2x1xf32> to vector<2x128xf32>
    %6 = arith.subf %0, %5 : vector<2x128xf32>
    %7 = arith.mulf %6, %6 : vector<2x128xf32>
    %cst_2 = arith.constant dense<0.000000e+00> : vector<2xf32>
    %8 = vector.multi_reduction <add>, %7, %cst_2 [1] : vector<2x128xf32> to vector<2xf32>
    %9 = vector.shape_cast %8 : vector<2xf32> to vector<2x1xf32>
    %cst_3 = arith.constant 7.812500e-03 : f32
    %10 = vector.broadcast %cst_3 : f32 to vector<2x1xf32>
    %11 = arith.mulf %9, %10 : vector<2x1xf32>
    %cst_4 = arith.constant 9.99999974E-6 : f32
    %12 = vector.broadcast %cst_4 : f32 to vector<2x1xf32>
    %13 = arith.addf %11, %12 : vector<2x1xf32>
    %14 = math.rsqrt %13 : vector<2x1xf32>
    %15 = vector.broadcast %14 : vector<2x1xf32> to vector<2x128xf32>
    %16 = arith.mulf %6, %15 : vector<2x128xf32>
    %c0_5 = arith.constant 0 : index
    %c0_6 = arith.constant 0 : index
    %17 = vector.load %arg2[%c0_5, %c0_6] : memref<1x128xf32, #tpu.memory_space<vmem>>, vector<1x128xf32>
    %18 = vector.broadcast %17 : vector<1x128xf32> to vector<2x128xf32>
    %19 = arith.mulf %16, %18 : vector<2x128xf32>
    %c0_7 = arith.constant 0 : index
    %c0_8 = arith.constant 0 : index
    %20 = vector.load %arg3[%c0_7, %c0_8] : memref<1x128xf32, #tpu.memory_space<vmem>>, vector<1x128xf32>
    %21 = vector.broadcast %20 : vector<1x128xf32> to vector<2x128xf32>
    %22 = arith.addf %19, %21 : vector<2x128xf32>
    %c0_9 = arith.constant 0 : index
    %c0_10 = arith.constant 0 : index
    %23 = vector.load %arg4[%c0_9, %c0_10] : memref<128x128xf32, #tpu.memory_space<vmem>>, vector<128x128xf32>
    %cst_11 = arith.constant dense<0.000000e+00> : vector<2x128xf32>
    %24 = tpu.matmul %22, %23, %cst_11 {dimension_numbers = #tpu.dot_dimension_numbers<[1], [0], [0], [1], [0, 0, 1, 1], [], []>} : vector<2x128xf32>, vector<128x128xf32>, vector<2x128xf32> -> vector<2x128xf32>
    %c0_12 = arith.constant 0 : index
    %c0_13 = arith.constant 0 : index
    %25 = vector.load %arg5[%c0_12, %c0_13] : memref<1x128xf32, #tpu.memory_space<vmem>>, vector<1x128xf32>
    %26 = vector.broadcast %25 : vector<1x128xf32> to vector<2x128xf32>
    %27 = arith.addf %24, %26 : vector<2x128xf32>
    %c0_14 = arith.constant 0 : index
    %c0_15 = arith.constant 0 : index
    %28 = vector.load %arg1[%c0_14, %c0_15] : memref<2x128xf32, #tpu.memory_space<vmem>>, vector<2x128xf32>
    %29 = arith.addf %27, %28 : vector<2x128xf32>
    %c0_16 = arith.constant 0 : index
    %c0_17 = arith.constant 0 : index
    %30 = vector.load %arg6[%c0_16, %c0_17] : memref<2x128xf32, #tpu.memory_space<vmem>>, vector<2x128xf32>
    tpu.vector_store %arg6[%c0_16, %c0_17], %29 {strides = array<i32>} : memref<2x128xf32, #tpu.memory_space<vmem>>, vector<2x128xf32>,
    return
  }
  func.func @transform_0(%arg0: i32) -> (i32, i32) {
    %c0_i32 = arith.constant 0 : i32
    %c0_i32_0 = arith.constant 0 : i32
    return %arg0, %c0_i32 : i32, i32
  }
  func.func @transform_1(%arg0: i32) -> (i32, i32) {
    %c0_i32 = arith.constant 0 : i32
    %c0_i32_0 = arith.constant 0 : i32
    %c0_i32_1 = arith.constant 0 : i32
    return %c0_i32, %c0_i32_0 : i32, i32
  }
  func.func @transform_2(%arg0: i32) -> (i32, i32) {
    %c0_i32 = arith.constant 0 : i32
    %c0_i32_0 = arith.constant 0 : i32
    %c0_i32_1 = arith.constant 0 : i32
    return %c0_i32, %c0_i32_0 : i32, i32
  }
  func.func @transform_3(%arg0: i32) -> (i32, i32) {
    %c0_i32 = arith.constant 0 : i32
    %c0_i32_0 = arith.constant 0 : i32
    %c0_i32_1 = arith.constant 0 : i32
    return %c0_i32, %c0_i32_0 : i32, i32
  }
  func.func @transform_4(%arg0: i32) -> (i32, i32) {
    %c0_i32 = arith.constant 0 : i32
    %c0_i32_0 = arith.constant 0 : i32
    %c0_i32_1 = arith.constant 0 : i32
    return %c0_i32, %c0_i32_0 : i32, i32
  }
  func.func @transform_5(%arg0: i32) -> (i32, i32) {
    %c0_i32 = arith.constant 0 : i32
    %c0_i32_0 = arith.constant 0 : i32
    return %arg0, %c0_i32 : i32, i32
  }
}

</mosaic_0001>

<llo_original>
// kernel: tpu_custom_call.1
$region0: #{tpu_custom_call.1}
  #allocation0 [shape = 'u32[]', space=smem, size = 0x4, offset = 0x4, fixed_abs, tag = 'smem constant byte address 0x4 - core index']
  #allocation1 [shape = 'u32[144,128]{1,0:T(1,128)}', space=vmem, size = 0x12000, scoped, tag = 'internal scratch']
  %s0 = inlined_call_operand.hbm [shape: f32[2,128], index: 0, kind: input, shape index: {}]
  %s1 = inlined_call_operand.vmem [shape: f32[1,128], index: 1, kind: input, shape index: {}]
  %s2 = inlined_call_operand.vmem [shape: f32[1,128], index: 2, kind: input, shape index: {}]
  %s3 = inlined_call_operand.hbm [shape: f32[128,128], index: 3, kind: input, shape index: {}]
  %s4 = inlined_call_operand.vmem [shape: f32[1,128], index: 4, kind: input, shape index: {}]
  %s5 = inlined_call_operand.hbm [shape: f32[2,128], index: 5, kind: output, shape index: {}]
  %s6 = sld [smem:[#allocation0]]
  $region38: #{tpu_custom_call.1} parent=0
    _
  %s8 = ssub.s32 1, %s6
  %s9 = scalar_select 0, %s8, %s6
  $region1: #{tpu_custom_call.1} parent=0
    #allocation2 [shape = 'u8[1024]{0}', space=vmem, size = 0x400, scoped, tag = 'input window, operand 0, single buffered']
    #allocation3 [shape = 's32[1]{0}', space=sflag, size = 0x4, scoped, tag = 'scoped memory for tpu_custom_call.1']
    #allocation4 [shape = 's32[1]{0}', space=sflag, size = 0x4, scoped, tag = 'scoped memory for tpu_custom_call.1']
    #allocation5 [shape = 'u8[65536]{0}', space=vmem, size = 0x10000, scoped, tag = 'input window, operand 3, single buffered']
    #allocation6 [shape = 's32[1]{0}', space=sflag, size = 0x4, scoped, tag = 'scoped memory for tpu_custom_call.1']
    #allocation7 [shape = 'u8[1024]{0}', space=vmem, size = 0x400, scoped, tag = 'output window, operand 0, single buffered']
    %10 = vsyncpa [#allocation3], 0
    %11 = vsyncpa [#allocation6], 0
    %12 = vsyncpa [#allocation4], 0
    // Predicated region
    $region2: #{tpu_custom_call.1} parent=1 // pred_check
      _
    $region3: #{tpu_custom_call.1} parent=1 // pred_check_branch
      %14 = sbr.rel (0) target = $region5
    $region4: #{tpu_custom_call.1} parent=1 // pred_region
      %s16 = ssub.s32 32, 32
      %17 = vsyncadd [#allocation3], %s16
      %s19 = sshll.u32 [#allocation2], 4
      %s20 = int_to_ptr.vmem [resolvable:$true] %s19
      %22 = dma.hbm_to_vmem [thread:$0]  %s0, 32, %s20, [#allocation3]
    $region5: #{tpu_custom_call.1} parent=1 // pred_fallthru
      _
    // Predicated region
    $region6: #{tpu_custom_call.1} parent=1 // pred_check
      _
    $region7: #{tpu_custom_call.1} parent=1 // pred_check_branch
      %24 = sbr.rel (0) target = $region9
    $region8: #{tpu_custom_call.1} parent=1 // pred_region
      _
    $region9: #{tpu_custom_call.1} parent=1 // pred_fallthru
      _
    // Predicated region
    $region10: #{tpu_custom_call.1} parent=1 // pred_check
      _
    $region11: #{tpu_custom_call.1} parent=1 // pred_check_branch
      %26 = sbr.rel (0) target = $region13
    $region12: #{tpu_custom_call.1} parent=1 // pred_region
      _
    $region13: #{tpu_custom_call.1} parent=1 // pred_fallthru
      _
    // Predicated region
    $region14: #{tpu_custom_call.1} parent=1 // pred_check
      _
    $region15: #{tpu_custom_call.1} parent=1 // pred_check_branch
      %28 = sbr.rel (0) target = $region17
    $region16: #{tpu_custom_call.1} parent=1 // pred_region
      %s30 = ssub.s32 2048, 2048
      %31 = vsyncadd [#allocation6], %s30
      %s32 = sshll.u32 [#allocation5], 4
      %s33 = int_to_ptr.vmem [resolvable:$true] %s32
      %38 = dma.hbm_to_vmem [thread:$0]  %s3, 2048, %s33, [#allocation6], 128, 128, 8
    $region17: #{tpu_custom_call.1} parent=1 // pred_fallthru
      _
    // Predicated region
    $region18: #{tpu_custom_call.1} parent=1 // pred_check
      _
    $region19: #{tpu_custom_call.1} parent=1 // pred_check_branch
      %40 = sbr.rel (0) target = $region21
    $region20: #{tpu_custom_call.1} parent=1 // pred_region
      _
    $region21: #{tpu_custom_call.1} parent=1 // pred_fallthru
      _
    // Predicated region
    $region22: #{tpu_custom_call.1} parent=1 // pred_check
      _
    $region23: #{tpu_custom_call.1} parent=1 // pred_check_branch
      %42 = sbr.rel (0) target = $region25
    $region24: #{tpu_custom_call.1} parent=1 // pred_region
      %43 = dma.done [#allocation3], 32
    $region25: #{tpu_custom_call.1} parent=1 // pred_fallthru
      _
    // Predicated region
    $region26: #{tpu_custom_call.1} parent=1 // pred_check
      _
    $region27: #{tpu_custom_call.1} parent=1 // pred_check_branch
      %45 = sbr.rel (0) target = $region29
    $region28: #{tpu_custom_call.1} parent=1 // pred_region
      %46 = dma.done [#allocation6], 2048
    $region29: #{tpu_custom_call.1} parent=1 // pred_fallthru
      _
    %v47 = vld [vmem:[#allocation2] sm:$0x3]
    %vm48 = vcmask 1041408
    %v49 = vsel %vm48, %v47, 0.0
    %50 = vadd.xlane.f32.xlu0 %v49
    %v51 = vpop.xlane.xlu0 %50
    %v52 = vmul.f32 %v51, 0.0078125
    %v53 = vsub.f32 %v47, %v52
    %v54 = vmul.f32 %v53, %v53
    %v55 = vsel %vm48, %v54, 0.0
    %56 = vadd.xlane.f32.xlu0 %v55
    %v57 = vpop.xlane.xlu0 %56
    %v58 = vmul.f32 %v57, 0.0078125
    %v59 = vadd.f32 %v58, 1e-05
    %v60 = vrsqrt.pop %v59
    %v61 = vmul.f32 %v53, %v60
    %v62 = vld [vmem:[%s1] sm:$0x1]
    %v64 = vlaneseq
    %v65 = vshrl.u32 %v64, 7
    %v66 = vsub.s32 0, %v65
    %v67 = vrot.slane %v62, %v66
    %v69 = vmul.f32 %v61, %v67
    %v70 = vld [vmem:[%s2] sm:$0x1]
    %v72 = vlaneseq
    %v73 = vshrl.u32 %v72, 7
    %v74 = vsub.s32 0, %v73
    %v75 = vrot.slane %v70, %v74
    %v77 = vadd.f32 %v69, %v75
    %v78 = vld [vmem:[#allocation5] sm:$0xff]
    %v79 = vld [vmem:[#allocation5 + $0x8] sm:$0xff]
    %v80 = vld [vmem:[#allocation5 + $0x10] sm:$0xff]
    %v81 = vld [vmem:[#allocation5 + $0x18] sm:$0xff]
    %v82 = vld [vmem:[#allocation5 + $0x20] sm:$0xff]
    %v83 = vld [vmem:[#allocation5 + $0x28] sm:$0xff]
    %v84 = vld [vmem:[#allocation5 + $0x30] sm:$0xff]
    %v85 = vld [vmem:[#allocation5 + $0x38] sm:$0xff]
    %v86 = vld [vmem:[#allocation5 + $0x40] sm:$0xff]
    %v87 = vld [vmem:[#allocation5 + $0x48] sm:$0xff]
    %v88 = vld [vmem:[#allocation5 + $0x50] sm:$0xff]
    %v89 = vld [vmem:[#allocation5 + $0x58] sm:$0xff]
    %v90 = vld [vmem:[#allocation5 + $0x60] sm:$0xff]
    %v91 = vld [vmem:[#allocation5 + $0x68] sm:$0xff]
    %v92 = vld [vmem:[#allocation5 + $0x70] sm:$0xff]
    %v93 = vld [vmem:[#allocation5 + $0x78] sm:$0xff]
    %v94 = vld [vmem:[%s4] sm:$0x1]
    %v96 = vlaneseq
    %v97 = vshrl.u32 %v96, 7
    %v98 = vsub.s32 0, %v97
    %v99 = vrot.slane %v94, %v98
    %101 = vmatprep.subr.mxu0 0.0
    %102 = vmatpush1.msra.mxu0 %v93
    %103 = vmatprep.subr.mxu0 0.0
    %104 = vmatpush1.msra.mxu0 %v92
    %105 = vmatprep.subr.mxu0 0.0
    %106 = vmatpush1.msra.mxu0 %v91
    %107 = vmatprep.subr.mxu0 0.0
    %108 = vmatpush1.msra.mxu0 %v90
    %109 = vmatprep.subr.mxu0 0.0
    %110 = vmatpush1.msra.mxu0 %v89
    %111 = vmatprep.subr.mxu0 0.0
    %112 = vmatpush1.msra.mxu0 %v88
    %113 = vmatprep.subr.mxu0 0.0
    %114 = vmatpush1.msra.mxu0 %v87
    %115 = vmatprep.subr.mxu0 0.0
    %116 = vmatpush1.msra.mxu0 %v86
    %117 = vmatprep.subr.mxu0 0.0
    %118 = vmatpush1.msra.mxu0 %v85
    %119 = vmatprep.subr.mxu0 0.0
    %120 = vmatpush1.msra.mxu0 %v84
    %121 = vmatprep.subr.mxu0 0.0
    %122 = vmatpush1.msra.mxu0 %v83
    %123 = vmatprep.subr.mxu0 0.0
    %124 = vmatpush1.msra.mxu0 %v82
    %125 = vmatprep.subr.mxu0 0.0
    %126 = vmatpush1.msra.mxu0 %v81
    %127 = vmatprep.subr.mxu0 0.0
    %128 = vmatpush1.msra.mxu0 %v80
    %129 = vmatprep.subr.mxu0 0.0
    %130 = vmatpush1.msra.mxu0 %v79
    %131 = vmatprep.subr.mxu0 0.0
    %132 = vmatpush1.msra.mxu0 %v78
    %133 = vmatprep.subr.mxu0 0.0
    %134 = vmatpush2.msra.mxu0 0.0
    %135 = vmatprep.subr.mxu0 0.0
    %136 = vmatpush2.msra.mxu0 0.0
    %137 = vmatprep.subr.mxu0 0.0
    %138 = vmatpush2.msra.mxu0 0.0
    %139 = vmatprep.subr.mxu0 0.0
    %140 = vmatpush2.msra.mxu0 0.0
    %141 = vmatprep.subr.mxu0 0.0
    %142 = vmatpush2.msra.mxu0 0.0
    %143 = vmatprep.subr.mxu0 0.0
    %144 = vmatpush2.msra.mxu0 0.0
    %145 = vmatprep.subr.mxu0 0.0
    %146 = vmatpush2.msra.mxu0 0.0
    %147 = vmatprep.subr.mxu0 0.0
    %148 = vmatpush2.msra.mxu0 0.0
    %149 = vmatprep.subr.mxu0 0.0
    %150 = vmatpush2.msra.mxu0 0.0
    %151 = vmatprep.subr.mxu0 0.0
    %152 = vmatpush2.msra.mxu0 0.0
    %153 = vmatprep.subr.mxu0 0.0
    %154 = vmatpush2.msra.mxu0 0.0
    %155 = vmatprep.subr.mxu0 0.0
    %156 = vmatpush2.msra.mxu0 0.0
    %157 = vmatprep.subr.mxu0 0.0
    %158 = vmatpush2.msra.mxu0 0.0
    %159 = vmatprep.subr.mxu0 0.0
    %160 = vmatpush2.msra.mxu0 0.0
    %161 = vmatprep.subr.mxu0 0.0
    %162 = vmatpush2.msra.mxu0 0.0
    %163 = vmatprep.subr.mxu0 0.0
    %164 = vmatpush2.msra.mxu0 0.0
    %165 = vmatprep.mubr.f32.mxu0 0.0
    %166 = vmatmul.mubr.f32.gmra.mxu0 %v77
    %v167 = vpop.f32.mrf.mxu0
    %v168 = vadd.f32 %v99, %v167
    %v169 = vpop.f32.mrf.mxu0
    %170 = vdwg.mxu0
    %v171 = vadd.f32 %v168, %v47
    %172 = vst [vmem:[#allocation7] sm:$0x3] %v171
    // Predicated region
    $region30: #{tpu_custom_call.1} parent=1 // pred_check
      _
    $region31: #{tpu_custom_call.1} parent=1 // pred_check_branch
      %174 = sbr.rel (0) target = $region33
    $region32: #{tpu_custom_call.1} parent=1 // pred_region
      %s176 = ssub.s32 32, 32
      %177 = vsyncadd [#allocation4], %s176
      %s179 = sshll.u32 [#allocation7], 4
      %s180 = int_to_ptr.vmem [resolvable:$true] %s179
      %182 = dma.vmem_to_hbm [thread:$0]  %s180, 32, %s5, [#allocation4]
    $region33: #{tpu_custom_call.1} parent=1 // pred_fallthru
      _
    // Predicated region
    $region34: #{tpu_custom_call.1} parent=1 // pred_check
      _
    $region35: #{tpu_custom_call.1} parent=1 // pred_check_branch
      %184 = sbr.rel (0) target = $region37
    $region36: #{tpu_custom_call.1} parent=1 // pred_region
      %185 = dma.done [#allocation4], 32
    $region37: #{tpu_custom_call.1} parent=1 // pred_fallthru
      _
    %186 = vsyncpa [#allocation3], 1
    %187 = vsyncpa [#allocation6], 1
    %188 = vsyncpa [#allocation4], 1

</llo_original>
